<compile_context>
chip_gen: v6e
topology: v6e:2x2x1
jax: 0.10.0
libtpu: 0.0.40
codegen_flags: <defaults>
</compile_context>

<pallas_src>
import jax
import jax.numpy as jnp
from jax import lax
from jax.experimental import pallas as pl
from jax.experimental.pallas import tpu as pltpu


def head_forward(x, wk, wq, wv):
    """Single-head causal self-attention.

    x: (B, T, C); wk/wq/wv: (C, H) (nn.Linear weight, pre-transposed so the
    kernel computes x @ W).  Returns (B, T, H).
    """
    B, T, C = x.shape
    H = wk.shape[1]
    scale = H ** -0.5

    # ---- batch Bt examples per grid step (amortize per-step overhead and
    # ---- give the projection matmuls an MXU-sized M dimension) ------------
    target_rows = 512
    bt = max(1, min(B, max(1, target_rows // max(T, 1))))
    while B % bt:
        bt -= 1
    # Prefer an even number of grid steps (v7x: 2 TensorCores share the
    # parallel axis) as long as the per-step M stays >= 128 rows.
    if (B // bt) % 2 == 1:
        for cand in range(bt - 1, 0, -1):
            if B % cand == 0 and (B // cand) % 2 == 0 and cand * T >= 128:
                bt = cand
                break
    grid = (B // bt,)

    # Lane-dense store only when the packed row width is a multiple of 128
    # lanes and the block's sublane dim satisfies the (8, 128) rule.
    pack = (T * H) % 128 == 0 and T <= 512 and (bt == B or bt % 8 == 0)

    def kernel(x_ref, wk_ref, wq_ref, wv_ref, o_ref):
        cdt = x_ref.dtype                        # MXU operand dtype (bf16 stays bf16)
        xf = x_ref[...].reshape(bt * T, C)       # flattened slab -> big MXU M dim

        # Projections: native-dtype operands, f32 accumulation on the MXU.
        k = jnp.dot(xf, wk_ref[...], preferred_element_type=jnp.float32)
        q = jnp.dot(xf, wq_ref[...], preferred_element_type=jnp.float32)
        v = jnp.dot(xf, wv_ref[...], preferred_element_type=jnp.float32)

        q = q * scale                            # fold 1/sqrt(H) into q (O(T*H))

        q3 = q.astype(cdt).reshape(bt, T, H)
        k3 = k.astype(cdt).reshape(bt, T, H)
        v3 = v.astype(cdt).reshape(bt, T, H)

        # Batched Q @ K^T without materializing a transpose.
        scores = lax.dot_general(
            q3, k3,
            dimension_numbers=(((2,), (2,)), ((0,), (0,))),
            preferred_element_type=jnp.float32)              # (bt, T, T), f32

        # Causal mask, built once per grid step and broadcast over bt.
        row = lax.broadcasted_iota(jnp.int32, (T, T), 0)
        col = lax.broadcasted_iota(jnp.int32, (T, T), 1)
        scores = jnp.where((col <= row)[None, :, :], scores, -jnp.inf)

        # Numerically stable softmax in f32.
        scores = scores - jnp.max(scores, axis=-1, keepdims=True)
        p = jnp.exp(scores)
        denom = jnp.sum(p, axis=-1, keepdims=True)
        r = pl.reciprocal(denom, approx=True)                # EUP slot (free here)
        r = r * (2.0 - denom * r)                            # one Newton step
        p = p * r

        # TODO(synk): training-mode attention dropout not implemented
        # (eval semantics: nn.Dropout is identity).

        out = lax.dot_general(
            p.astype(cdt), v3,
            dimension_numbers=(((2,), (1,)), ((0,), (0,))),
            preferred_element_type=jnp.float32)              # (bt, T, H), f32
        out = out.astype(o_ref.dtype)

        if pack:
            # (bt, T, H) -> (bt, T*H): lane-dense (unmasked) store.
            o_ref[...] = jnp.concatenate(
                [out[:, t, :] for t in range(T)], axis=-1)
        else:
            o_ref[...] = out

    if pack:
        out_shape = jax.ShapeDtypeStruct((B, T * H), x.dtype)
        out_specs = pl.BlockSpec((bt, T * H), lambda b: (b, 0))
    else:
        out_shape = jax.ShapeDtypeStruct((B, T, H), x.dtype)
        out_specs = pl.BlockSpec((bt, T, H), lambda b: (b, 0, 0))

    y = pl.pallas_call(
        kernel,
        out_shape=out_shape,
        grid_spec=pltpu.PrefetchScalarGridSpec(
            num_scalar_prefetch=0,
            grid=grid,
            in_specs=[
                pl.BlockSpec((bt, T, C), lambda b: (b, 0, 0)),
                pl.BlockSpec((C, H), lambda b: (0, 0)),
                pl.BlockSpec((C, H), lambda b: (0, 0)),
                pl.BlockSpec((C, H), lambda b: (0, 0)),
            ],
            out_specs=out_specs,
        ),
        compiler_params=pltpu.CompilerParams(
            dimension_semantics=("parallel",),
            vmem_limit_bytes=48 * 1024 * 1024,   # safe on v5e/v6e/v7x; headroom for bigger T
        ),
    )(x, wk, wq, wv)

    if pack:
        y = y.reshape(B, T, H)
    return y


def head_reference(x, wk, wq, wv):
    """Pure-JAX reference mirroring the PyTorch forward (eval mode)."""
    k = x @ wk
    q = x @ wq
    v = x @ wv
    wei = (q @ jnp.swapaxes(k, -2, -1)) * (k.shape[-1] ** -0.5)
    T = x.shape[1]
    tril = jnp.tril(jnp.ones((T, T), dtype=bool))
    wei = jnp.where(tril, wei, -jnp.inf)
    wei = jax.nn.softmax(wei, axis=-1)
    return wei @ v


if __name__ == "__main__":
    # Shapes consistent with the module: batch=2, block_size(T)=8,
    # n_embd(C)=32, head_size(H)=16, dropout=0.0 (eval -> identity).
    B, T, C, H = 2, 8, 32, 16

    key = jax.random.PRNGKey(0)
    kx, kk, kq, kv = jax.random.split(key, 4)

    x = jax.random.normal(kx, (B, T, C), dtype=jnp.float32)
    # deterministic synthetic weights (stored as [C, H] = W.T of nn.Linear)
    wk = jax.random.normal(kk, (C, H), dtype=jnp.float32) * (C ** -0.5)
    wq = jax.random.normal(kq, (C, H), dtype=jnp.float32) * (C ** -0.5)
    wv = jax.random.normal(kv, (C, H), dtype=jnp.float32) * (C ** -0.5)

    out = jax.block_until_ready(head_forward(x, wk, wq, wv))
    ref = head_reference(x, wk, wq, wv)

    assert out.shape == (B, T, H)
    assert jnp.allclose(out, ref, atol=1e-4, rtol=1e-4), "mismatch vs reference"

    print("KERNEL_OK")
</pallas_src>

<mosaic_0001>
module attributes {stable_mosaic.version = 11 : i64} {
  func.func @kernel(%arg0: i32, %arg1: memref<2x8x32xf32, #tpu.memory_space<vmem>>, %arg2: memref<32x16xf32, #tpu.memory_space<vmem>>, %arg3: memref<32x16xf32, #tpu.memory_space<vmem>>, %arg4: memref<32x16xf32, #tpu.memory_space<vmem>>, %arg5: memref<2x128xf32, #tpu.memory_space<vmem>>) attributes {dimension_semantics = [#tpu.dimension_semantics<parallel>], iteration_bounds = array<i64: 1>, scalar_prefetch = 0 : i64, scratch_operands = 0 : i64, tpu.core_type = #tpu.core_type<tc>, window_params = [{transform_indices = @transform_0, window_bounds = array<i64: 2, 8, 32>}, {pipeline_mode = #tpu.pipeline_mode<synchronous>, transform_indices = @transform_1, window_bounds = array<i64: 32, 16>}, {pipeline_mode = #tpu.pipeline_mode<synchronous>, transform_indices = @transform_2, window_bounds = array<i64: 32, 16>}, {pipeline_mode = #tpu.pipeline_mode<synchronous>, transform_indices = @transform_3, window_bounds = array<i64: 32, 16>}, {transform_indices = @transform_4, window_bounds = array<i64: 2, 128>}]} {
    %c0 = arith.constant 0 : index
    %c0_0 = arith.constant 0 : index
    %c0_1 = arith.constant 0 : index
    %0 = vector.load %arg1[%c0, %c0_0, %c0_1] : memref<2x8x32xf32, #tpu.memory_space<vmem>>, vector<2x8x32xf32>
    %1 = vector.shape_cast %0 : vector<2x8x32xf32> to vector<16x32xf32>
    %c0_2 = arith.constant 0 : index
    %c0_3 = arith.constant 0 : index
    %2 = vector.load %arg2[%c0_2, %c0_3] : memref<32x16xf32, #tpu.memory_space<vmem>>, vector<32x16xf32>
    %cst = arith.constant dense<0.000000e+00> : vector<16x16xf32>
    %3 = tpu.matmul %1, %2, %cst {dimension_numbers = #tpu.dot_dimension_numbers<[1], [0], [0], [1], [0, 0, 1, 1], [], []>} : vector<16x32xf32>, vector<32x16xf32>, vector<16x16xf32> -> vector<16x16xf32>
    %c0_4 = arith.constant 0 : index
    %c0_5 = arith.constant 0 : index
    %4 = vector.load %arg3[%c0_4, %c0_5] : memref<32x16xf32, #tpu.memory_space<vmem>>, vector<32x16xf32>
    %cst_6 = arith.constant dense<0.000000e+00> : vector<16x16xf32>
    %5 = tpu.matmul %1, %4, %cst_6 {dimension_numbers = #tpu.dot_dimension_numbers<[1], [0], [0], [1], [0, 0, 1, 1], [], []>} : vector<16x32xf32>, vector<32x16xf32>, vector<16x16xf32> -> vector<16x16xf32>
    %c0_7 = arith.constant 0 : index
    %c0_8 = arith.constant 0 : index
    %6 = vector.load %arg4[%c0_7, %c0_8] : memref<32x16xf32, #tpu.memory_space<vmem>>, vector<32x16xf32>
    %cst_9 = arith.constant dense<0.000000e+00> : vector<16x16xf32>
    %7 = tpu.matmul %1, %6, %cst_9 {dimension_numbers = #tpu.dot_dimension_numbers<[1], [0], [0], [1], [0, 0, 1, 1], [], []>} : vector<16x32xf32>, vector<32x16xf32>, vector<16x16xf32> -> vector<16x16xf32>
    %cst_10 = arith.constant 2.500000e-01 : f32
    %8 = vector.broadcast %cst_10 : f32 to vector<16x16xf32>
    %9 = arith.mulf %5, %8 : vector<16x16xf32>
    %10 = vector.shape_cast %9 : vector<16x16xf32> to vector<2x8x16xf32>
    %11 = vector.shape_cast %3 : vector<16x16xf32> to vector<2x8x16xf32>
    %12 = vector.shape_cast %7 : vector<16x16xf32> to vector<2x8x16xf32>
    %cst_11 = arith.constant dense<0.000000e+00> : vector<2x8x8xf32>
    %13 = tpu.matmul %10, %11, %cst_11 {dimension_numbers = #tpu.dot_dimension_numbers<[2], [2], [1], [1], [0, 0, 0, 1, 1, 1], [0], [0]>} : vector<2x8x16xf32>, vector<2x8x16xf32>, vector<2x8x8xf32> -> vector<2x8x8xf32>
    %14 = tpu.iota {dimensions = array<i32: 0>} : vector<8x8xi32>
    %15 = tpu.iota {dimensions = array<i32: 1>} : vector<8x8xi32>
    %16 = arith.cmpi sle, %15, %14 : vector<8x8xi32>
    %17 = vector.shape_cast %16 : vector<8x8xi1> to vector<1x8x8xi1>
    %cst_12 = arith.constant 0xFF800000 : f32
    %18 = vector.shape_cast %17 : vector<1x8x8xi1> to vector<1x8x8xi1>
    %19 = vector.broadcast %18 : vector<1x8x8xi1> to vector<2x8x8xi1>
    %20 = vector.broadcast %cst_12 : f32 to vector<2x8x8xf32>
    %21 = arith.select %19, %13, %20 : vector<2x8x8xi1>, vector<2x8x8xf32>
    %cst_13 = arith.constant dense<0xFF800000> : vector<2x8xf32>
    %22 = vector.multi_reduction <maximumf>, %21, %cst_13 [2] : vector<2x8x8xf32> to vector<2x8xf32>
    %23 = vector.shape_cast %22 : vector<2x8xf32> to vector<2x8x1xf32>
    %24 = vector.broadcast %23 : vector<2x8x1xf32> to vector<2x8x8xf32>
    %25 = arith.subf %21, %24 : vector<2x8x8xf32>
    %26 = math.exp %25 : vector<2x8x8xf32>
    %cst_14 = arith.constant dense<0.000000e+00> : vector<2x8xf32>
    %27 = vector.multi_reduction <add>, %26, %cst_14 [2] : vector<2x8x8xf32> to vector<2x8xf32>
    %28 = vector.shape_cast %27 : vector<2x8xf32> to vector<2x8x1xf32>
    %29 = tpu.reciprocal %28 {approx = true} : vector<2x8x1xf32> -> vector<2x8x1xf32>
    %30 = arith.mulf %28, %29 : vector<2x8x1xf32>
    %cst_15 = arith.constant 2.000000e+00 : f32
    %31 = vector.broadcast %cst_15 : f32 to vector<2x8x1xf32>
    %32 = arith.subf %31, %30 : vector<2x8x1xf32>
    %33 = arith.mulf %29, %32 : vector<2x8x1xf32>
    %34 = vector.broadcast %33 : vector<2x8x1xf32> to vector<2x8x8xf32>
    %35 = arith.mulf %26, %34 : vector<2x8x8xf32>
    %cst_16 = arith.constant dense<0.000000e+00> : vector<2x8x16xf32>
    %36 = tpu.matmul %35, %12, %cst_16 {dimension_numbers = #tpu.dot_dimension_numbers<[2], [1], [1], [2], [0, 0, 0, 1, 1, 2], [0], [0]>} : vector<2x8x8xf32>, vector<2x8x16xf32>, vector<2x8x16xf32> -> vector<2x8x16xf32>
    %37 = vector.extract_strided_slice %36 {offsets = [0, 0, 0], sizes = [2, 1, 16], strides = [1, 1, 1]} : vector<2x8x16xf32> to vector<2x1x16xf32>
    %38 = vector.shape_cast %37 : vector<2x1x16xf32> to vector<2x16xf32>
    %39 = vector.extract_strided_slice %36 {offsets = [0, 1, 0], sizes = [2, 1, 16], strides = [1, 1, 1]} : vector<2x8x16xf32> to vector<2x1x16xf32>
    %40 = vector.shape_cast %39 : vector<2x1x16xf32> to vector<2x16xf32>
    %41 = vector.extract_strided_slice %36 {offsets = [0, 2, 0], sizes = [2, 1, 16], strides = [1, 1, 1]} : vector<2x8x16xf32> to vector<2x1x16xf32>
    %42 = vector.shape_cast %41 : vector<2x1x16xf32> to vector<2x16xf32>
    %43 = vector.extract_strided_slice %36 {offsets = [0, 3, 0], sizes = [2, 1, 16], strides = [1, 1, 1]} : vector<2x8x16xf32> to vector<2x1x16xf32>
    %44 = vector.shape_cast %43 : vector<2x1x16xf32> to vector<2x16xf32>
    %45 = vector.extract_strided_slice %36 {offsets = [0, 4, 0], sizes = [2, 1, 16], strides = [1, 1, 1]} : vector<2x8x16xf32> to vector<2x1x16xf32>
    %46 = vector.shape_cast %45 : vector<2x1x16xf32> to vector<2x16xf32>
    %47 = vector.extract_strided_slice %36 {offsets = [0, 5, 0], sizes = [2, 1, 16], strides = [1, 1, 1]} : vector<2x8x16xf32> to vector<2x1x16xf32>
    %48 = vector.shape_cast %47 : vector<2x1x16xf32> to vector<2x16xf32>
    %49 = vector.extract_strided_slice %36 {offsets = [0, 6, 0], sizes = [2, 1, 16], strides = [1, 1, 1]} : vector<2x8x16xf32> to vector<2x1x16xf32>
    %50 = vector.shape_cast %49 : vector<2x1x16xf32> to vector<2x16xf32>
    %51 = vector.extract_strided_slice %36 {offsets = [0, 7, 0], sizes = [2, 1, 16], strides = [1, 1, 1]} : vector<2x8x16xf32> to vector<2x1x16xf32>
    %52 = vector.shape_cast %51 : vector<2x1x16xf32> to vector<2x16xf32>
    %53 = tpu.concatenate %38, %40, %42, %44, %46, %48, %50, %52 in 1 : vector<2x16xf32>, vector<2x16xf32>, vector<2x16xf32>, vector<2x16xf32>, vector<2x16xf32>, vector<2x16xf32>, vector<2x16xf32>, vector<2x16xf32> -> vector<2x128xf32>
    %c0_17 = arith.constant 0 : index
    %c0_18 = arith.constant 0 : index
    %54 = vector.load %arg5[%c0_17, %c0_18] : memref<2x128xf32, #tpu.memory_space<vmem>>, vector<2x128xf32>
    tpu.vector_store %arg5[%c0_17, %c0_18], %53 {strides = array<i32>} : memref<2x128xf32, #tpu.memory_space<vmem>>, vector<2x128xf32>,
    return
  }
  func.func @transform_0(%arg0: i32) -> (i32, i32, i32) {
    %c0_i32 = arith.constant 0 : i32
    %c0_i32_0 = arith.constant 0 : i32
    %c0_i32_1 = arith.constant 0 : i32
    return %arg0, %c0_i32, %c0_i32_0 : i32, i32, i32
  }
  func.func @transform_1(%arg0: i32) -> (i32, i32) {
    %c0_i32 = arith.constant 0 : i32
    %c0_i32_0 = arith.constant 0 : i32
    %c0_i32_1 = arith.constant 0 : i32
    return %c0_i32, %c0_i32_0 : i32, i32
  }
  func.func @transform_2(%arg0: i32) -> (i32, i32) {
    %c0_i32 = arith.constant 0 : i32
    %c0_i32_0 = arith.constant 0 : i32
    %c0_i32_1 = arith.constant 0 : i32
    return %c0_i32, %c0_i32_0 : i32, i32
  }
  func.func @transform_3(%arg0: i32) -> (i32, i32) {
    %c0_i32 = arith.constant 0 : i32
    %c0_i32_0 = arith.constant 0 : i32
    %c0_i32_1 = arith.constant 0 : i32
    return %c0_i32, %c0_i32_0 : i32, i32
  }
  func.func @transform_4(%arg0: i32) -> (i32, i32) {
    %c0_i32 = arith.constant 0 : i32
    %c0_i32_0 = arith.constant 0 : i32
    return %arg0, %c0_i32 : i32, i32
  }
}

</mosaic_0001>

<llo_original>
// kernel: tpu_custom_call.1
$region0: #{tpu_custom_call.1}
  #allocation0 [shape = 'u32[]', space=smem, size = 0x4, offset = 0x4, fixed_abs, tag = 'smem constant byte address 0x4 - core index']
  #allocation1 [shape = 'u32[144,128]{1,0:T(1,128)}', space=vmem, size = 0x12000, scoped, tag = 'internal scratch']
  %s0 = inlined_call_operand.vmem [shape: f32[2,8,32], index: 0, kind: input, shape index: {}]
  %s1 = inlined_call_operand.vmem [shape: f32[32,16], index: 1, kind: input, shape index: {}]
  %s2 = inlined_call_operand.vmem [shape: f32[32,16], index: 2, kind: input, shape index: {}]
  %s3 = inlined_call_operand.vmem [shape: f32[32,16], index: 3, kind: input, shape index: {}]
  %s4 = inlined_call_operand.hbm [shape: f32[2,128], index: 4, kind: output, shape index: {}]
  %s5 = sld [smem:[#allocation0]]
  $region26: #{tpu_custom_call.1} parent=0
    _
  %s7 = ssub.s32 1, %s5
  %s8 = scalar_select 0, %s7, %s5
  $region1: #{tpu_custom_call.1} parent=0
    #allocation2 [shape = 'u8[1024]{0}', space=vmem, size = 0x400, scoped, tag = 'output window, operand 0, single buffered']
    #allocation3 [shape = 's32[1]{0}', space=sflag, size = 0x4, scoped, tag = 'scoped memory for tpu_custom_call.1']
    %9 = vsyncpa [#allocation3], 0
    // Predicated region
    $region2: #{tpu_custom_call.1} parent=1 // pred_check
      _
    $region3: #{tpu_custom_call.1} parent=1 // pred_check_branch
      %11 = sbr.rel (0) target = $region5
    $region4: #{tpu_custom_call.1} parent=1 // pred_region
      _
    $region5: #{tpu_custom_call.1} parent=1 // pred_fallthru
      _
    // Predicated region
    $region6: #{tpu_custom_call.1} parent=1 // pred_check
      _
    $region7: #{tpu_custom_call.1} parent=1 // pred_check_branch
      %13 = sbr.rel (0) target = $region9
    $region8: #{tpu_custom_call.1} parent=1 // pred_region
      _
    $region9: #{tpu_custom_call.1} parent=1 // pred_fallthru
      _
    // Predicated region
    $region10: #{tpu_custom_call.1} parent=1 // pred_check
      _
    $region11: #{tpu_custom_call.1} parent=1 // pred_check_branch
      %15 = sbr.rel (0) target = $region13
    $region12: #{tpu_custom_call.1} parent=1 // pred_region
      _
    $region13: #{tpu_custom_call.1} parent=1 // pred_fallthru
      _
    // Predicated region
    $region14: #{tpu_custom_call.1} parent=1 // pred_check
      _
    $region15: #{tpu_custom_call.1} parent=1 // pred_check_branch
      %17 = sbr.rel (0) target = $region17
    $region16: #{tpu_custom_call.1} parent=1 // pred_region
      _
    $region17: #{tpu_custom_call.1} parent=1 // pred_fallthru
      _
    %v18 = vld [vmem:[%s0] sm:$0xff]
    %v19 = vld [vmem:[%s0 + $0x8] sm:$0xff]
    %v20 = vld [vmem:[%s1] sm:$0xff]
    %v21 = vld [vmem:[%s1 + $0x8] sm:$0xff]
    %v22 = vld [vmem:[%s1 + $0x10] sm:$0xff]
    %v23 = vld [vmem:[%s1 + $0x18] sm:$0xff]
    %vm24 = vcmask 261120
    %v26 = vsel %vm24, %v18, 0
    %v29 = vsel %vm24, %v19, 0
    %31 = vmatprep.subr.mxu0 0.0
    %32 = vmatpush1.msra.mxu0 0.0
    %33 = vmatprep.subr.mxu0 0.0
    %34 = vmatpush1.msra.mxu0 0.0
    %35 = vmatprep.subr.mxu0 0.0
    %36 = vmatpush1.msra.mxu0 0.0
    %37 = vmatprep.subr.mxu0 0.0
    %38 = vmatpush1.msra.mxu0 0.0
    %39 = vmatprep.subr.mxu0 0.0
    %40 = vmatpush1.msra.mxu0 0.0
    %41 = vmatprep.subr.mxu0 0.0
    %42 = vmatpush1.msra.mxu0 0.0
    %43 = vmatprep.subr.mxu0 0.0
    %44 = vmatpush1.msra.mxu0 0.0
    %45 = vmatprep.subr.mxu0 0.0
    %46 = vmatpush1.msra.mxu0 0.0
    %47 = vmatprep.subr.mxu0 0.0
    %48 = vmatpush1.msra.mxu0 0.0
    %49 = vmatprep.subr.mxu0 0.0
    %50 = vmatpush1.msra.mxu0 0.0
    %51 = vmatprep.subr.mxu0 0.0
    %52 = vmatpush1.msra.mxu0 0.0
    %53 = vmatprep.subr.mxu0 0.0
    %54 = vmatpush1.msra.mxu0 0.0
    %55 = vmatprep.subr.mxu0 0.0
    %56 = vmatpush1.msra.mxu0 %v23
    %57 = vmatprep.subr.mxu0 0.0
    %58 = vmatpush1.msra.mxu0 %v22
    %59 = vmatprep.subr.mxu0 0.0
    %60 = vmatpush1.msra.mxu0 %v21
    %61 = vmatprep.subr.mxu0 0.0
    %62 = vmatpush1.msra.mxu0 %v20
    %63 = vmatprep.subr.mxu0 0.0
    %64 = vmatpush2.msra.mxu0 0.0
    %65 = vmatprep.subr.mxu0 0.0
    %66 = vmatpush2.msra.mxu0 0.0
    %67 = vmatprep.subr.mxu0 0.0
    %68 = vmatpush2.msra.mxu0 0.0
    %69 = vmatprep.subr.mxu0 0.0
    %70 = vmatpush2.msra.mxu0 0.0
    %71 = vmatprep.subr.mxu0 0.0
    %72 = vmatpush2.msra.mxu0 0.0
    %73 = vmatprep.subr.mxu0 0.0
    %74 = vmatpush2.msra.mxu0 0.0
    %75 = vmatprep.subr.mxu0 0.0
    %76 = vmatpush2.msra.mxu0 0.0
    %77 = vmatprep.subr.mxu0 0.0
    %78 = vmatpush2.msra.mxu0 0.0
    %79 = vmatprep.subr.mxu0 0.0
    %80 = vmatpush2.msra.mxu0 0.0
    %81 = vmatprep.subr.mxu0 0.0
    %82 = vmatpush2.msra.mxu0 0.0
    %83 = vmatprep.subr.mxu0 0.0
    %84 = vmatpush2.msra.mxu0 0.0
    %85 = vmatprep.subr.mxu0 0.0
    %86 = vmatpush2.msra.mxu0 0.0
    %87 = vmatprep.subr.mxu0 0.0
    %88 = vmatpush2.msra.mxu0 0.0
    %89 = vmatprep.subr.mxu0 0.0
    %90 = vmatpush2.msra.mxu0 0.0
    %91 = vmatprep.subr.mxu0 0.0
    %92 = vmatpush2.msra.mxu0 0.0
    %93 = vmatprep.subr.mxu0 0.0
    %94 = vmatpush2.msra.mxu0 0.0
    %95 = vmatprep.mubr.f32.mxu0 0.0
    %96 = vmatmul.mubr.f32.gmra.mxu0 %v26
    %v97 = vpop.f32.mrf.mxu0
    %v98 = vadd.f32 0.0, %v97
    %v99 = vpop.f32.mrf.mxu0
    %100 = vmatprep.mubr.f32.mxu0 0.0
    %101 = vmatmul.mubr.f32.gmra.mxu0 %v29
    %v102 = vpop.f32.mrf.mxu0
    %v103 = vadd.f32 0.0, %v102
    %v104 = vpop.f32.mrf.mxu0
    %105 = vdwg.mxu0
    %v106 = vld [vmem:[%s2] sm:$0xff]
    %v107 = vld [vmem:[%s2 + $0x8] sm:$0xff]
    %v108 = vld [vmem:[%s2 + $0x10] sm:$0xff]
    %v109 = vld [vmem:[%s2 + $0x18] sm:$0xff]
    %110 = vmatprep.subr.mxu0 0.0
    %111 = vmatpush1.msra.mxu0 0.0
    %112 = vmatprep.subr.mxu0 0.0
    %113 = vmatpush1.msra.mxu0 0.0
    %114 = vmatprep.subr.mxu0 0.0
    %115 = vmatpush1.msra.mxu0 0.0
    %116 = vmatprep.subr.mxu0 0.0
    %117 = vmatpush1.msra.mxu0 0.0
    %118 = vmatprep.subr.mxu0 0.0
    %119 = vmatpush1.msra.mxu0 0.0
    %120 = vmatprep.subr.mxu0 0.0
    %121 = vmatpush1.msra.mxu0 0.0
    %122 = vmatprep.subr.mxu0 0.0
    %123 = vmatpush1.msra.mxu0 0.0
    %124 = vmatprep.subr.mxu0 0.0
    %125 = vmatpush1.msra.mxu0 0.0
    %126 = vmatprep.subr.mxu0 0.0
    %127 = vmatpush1.msra.mxu0 0.0
    %128 = vmatprep.subr.mxu0 0.0
    %129 = vmatpush1.msra.mxu0 0.0
    %130 = vmatprep.subr.mxu0 0.0
    %131 = vmatpush1.msra.mxu0 0.0
    %132 = vmatprep.subr.mxu0 0.0
    %133 = vmatpush1.msra.mxu0 0.0
    %134 = vmatprep.subr.mxu0 0.0
    %135 = vmatpush1.msra.mxu0 %v109
    %136 = vmatprep.subr.mxu0 0.0
    %137 = vmatpush1.msra.mxu0 %v108
    %138 = vmatprep.subr.mxu0 0.0
    %139 = vmatpush1.msra.mxu0 %v107
    %140 = vmatprep.subr.mxu0 0.0
    %141 = vmatpush1.msra.mxu0 %v106
    %142 = vmatprep.subr.mxu0 0.0
    %143 = vmatpush2.msra.mxu0 0.0
    %144 = vmatprep.subr.mxu0 0.0
    %145 = vmatpush2.msra.mxu0 0.0
    %146 = vmatprep.subr.mxu0 0.0
    %147 = vmatpush2.msra.mxu0 0.0
    %148 = vmatprep.subr.mxu0 0.0
    %149 = vmatpush2.msra.mxu0 0.0
    %150 = vmatprep.subr.mxu0 0.0
    %151 = vmatpush2.msra.mxu0 0.0
    %152 = vmatprep.subr.mxu0 0.0
    %153 = vmatpush2.msra.mxu0 0.0
    %154 = vmatprep.subr.mxu0 0.0
    %155 = vmatpush2.msra.mxu0 0.0
    %156 = vmatprep.subr.mxu0 0.0
    %157 = vmatpush2.msra.mxu0 0.0
    %158 = vmatprep.subr.mxu0 0.0
    %159 = vmatpush2.msra.mxu0 0.0
    %160 = vmatprep.subr.mxu0 0.0
    %161 = vmatpush2.msra.mxu0 0.0
    %162 = vmatprep.subr.mxu0 0.0
    %163 = vmatpush2.msra.mxu0 0.0
    %164 = vmatprep.subr.mxu0 0.0
    %165 = vmatpush2.msra.mxu0 0.0
    %166 = vmatprep.subr.mxu0 0.0
    %167 = vmatpush2.msra.mxu0 0.0
    %168 = vmatprep.subr.mxu0 0.0
    %169 = vmatpush2.msra.mxu0 0.0
    %170 = vmatprep.subr.mxu0 0.0
    %171 = vmatpush2.msra.mxu0 0.0
    %172 = vmatprep.subr.mxu0 0.0
    %173 = vmatpush2.msra.mxu0 0.0
    %174 = vmatprep.mubr.f32.mxu0 0.0
    %175 = vmatmul.mubr.f32.gmra.mxu0 %v26
    %v176 = vpop.f32.mrf.mxu0
    %v177 = vadd.f32 0.0, %v176
    %v178 = vpop.f32.mrf.mxu0
    %179 = vmatprep.mubr.f32.mxu0 0.0
    %180 = vmatmul.mubr.f32.gmra.mxu0 %v29
    %v181 = vpop.f32.mrf.mxu0
    %v182 = vadd.f32 0.0, %v181
    %v183 = vpop.f32.mrf.mxu0
    %184 = vdwg.mxu0
    %v185 = vld [vmem:[%s3] sm:$0xff]
    %v186 = vld [vmem:[%s3 + $0x8] sm:$0xff]
    %v187 = vld [vmem:[%s3 + $0x10] sm:$0xff]
    %v188 = vld [vmem:[%s3 + $0x18] sm:$0xff]
    %189 = vmatprep.subr.mxu0 0.0
    %190 = vmatpush1.msra.mxu0 0.0
    %191 = vmatprep.subr.mxu0 0.0
    %192 = vmatpush1.msra.mxu0 0.0
    %193 = vmatprep.subr.mxu0 0.0
    %194 = vmatpush1.msra.mxu0 0.0
    %195 = vmatprep.subr.mxu0 0.0
    %196 = vmatpush1.msra.mxu0 0.0
    %197 = vmatprep.subr.mxu0 0.0
    %198 = vmatpush1.msra.mxu0 0.0
    %199 = vmatprep.subr.mxu0 0.0
    %200 = vmatpush1.msra.mxu0 0.0
    %201 = vmatprep.subr.mxu0 0.0
    %202 = vmatpush1.msra.mxu0 0.0
    %203 = vmatprep.subr.mxu0 0.0
    %204 = vmatpush1.msra.mxu0 0.0
    %205 = vmatprep.subr.mxu0 0.0
    %206 = vmatpush1.msra.mxu0 0.0
    %207 = vmatprep.subr.mxu0 0.0
    %208 = vmatpush1.msra.mxu0 0.0
    %209 = vmatprep.subr.mxu0 0.0
    %210 = vmatpush1.msra.mxu0 0.0
    %211 = vmatprep.subr.mxu0 0.0
    %212 = vmatpush1.msra.mxu0 0.0
    %213 = vmatprep.subr.mxu0 0.0
    %214 = vmatpush1.msra.mxu0 %v188
    %215 = vmatprep.subr.mxu0 0.0
    %216 = vmatpush1.msra.mxu0 %v187
    %217 = vmatprep.subr.mxu0 0.0
    %218 = vmatpush1.msra.mxu0 %v186
    %219 = vmatprep.subr.mxu0 0.0
    %220 = vmatpush1.msra.mxu0 %v185
    %221 = vmatprep.subr.mxu0 0.0
    %222 = vmatpush2.msra.mxu0 0.0
    %223 = vmatprep.subr.mxu0 0.0
    %224 = vmatpush2.msra.mxu0 0.0
    %225 = vmatprep.subr.mxu0 0.0
    %226 = vmatpush2.msra.mxu0 0.0
    %227 = vmatprep.subr.mxu0 0.0
    %228 = vmatpush2.msra.mxu0 0.0
    %229 = vmatprep.subr.mxu0 0.0
    %230 = vmatpush2.msra.mxu0 0.0
    %231 = vmatprep.subr.mxu0 0.0
    %232 = vmatpush2.msra.mxu0 0.0
    %233 = vmatprep.subr.mxu0 0.0
    %234 = vmatpush2.msra.mxu0 0.0
    %235 = vmatprep.subr.mxu0 0.0
    %236 = vmatpush2.msra.mxu0 0.0
    %237 = vmatprep.subr.mxu0 0.0
    %238 = vmatpush2.msra.mxu0 0.0
    %239 = vmatprep.subr.mxu0 0.0
    %240 = vmatpush2.msra.mxu0 0.0
    %241 = vmatprep.subr.mxu0 0.0
    %242 = vmatpush2.msra.mxu0 0.0
    %243 = vmatprep.subr.mxu0 0.0
    %244 = vmatpush2.msra.mxu0 0.0
    %245 = vmatprep.subr.mxu0 0.0
    %246 = vmatpush2.msra.mxu0 0.0
    %247 = vmatprep.subr.mxu0 0.0
    %248 = vmatpush2.msra.mxu0 0.0
    %249 = vmatprep.subr.mxu0 0.0
    %250 = vmatpush2.msra.mxu0 0.0
    %251 = vmatprep.subr.mxu0 0.0
    %252 = vmatpush2.msra.mxu0 0.0
    %253 = vmatprep.mubr.f32.mxu0 0.0
    %254 = vmatmul.mubr.f32.gmra.mxu0 %v26
    %v255 = vpop.f32.mrf.mxu0
    %v256 = vadd.f32 0.0, %v255
    %v257 = vpop.f32.mrf.mxu0
    %258 = vmatprep.mubr.f32.mxu0 0.0
    %259 = vmatmul.mubr.f32.gmra.mxu0 %v29
    %v260 = vpop.f32.mrf.mxu0
    %v261 = vadd.f32 0.0, %v260
    %v262 = vpop.f32.mrf.mxu0
    %263 = vdwg.mxu0
    %v264 = vmul.f32 %v177, 0.25
    %v265 = vmul.f32 %v182, 0.25
    %vm266 = vcmask 130048
    %v268 = vsel %vm266, %v264, 0
    %v271 = vsel %vm266, %v98, 0
    %273 = vmatprep.subr.mxu0 0.0
    %274 = vmatpush1.xpose.msra.mxu0 0.0
    %275 = vmatprep.subr.mxu0 0.0
    %276 = vmatpush1.xpose.msra.mxu0 0.0
    %277 = vmatprep.subr.mxu0 0.0
    %278 = vmatpush1.xpose.msra.mxu0 0.0
    %279 = vmatprep.subr.mxu0 0.0
    %280 = vmatpush1.xpose.msra.mxu0 0.0
    %281 = vmatprep.subr.mxu0 0.0
    %282 = vmatpush1.xpose.msra.mxu0 0.0
    %283 = vmatprep.subr.mxu0 0.0
    %284 = vmatpush1.xpose.msra.mxu0 0.0
    %285 = vmatprep.subr.mxu0 0.0
    %286 = vmatpush1.xpose.msra.mxu0 0.0
    %287 = vmatprep.subr.mxu0 0.0
    %288 = vmatpush1.xpose.msra.mxu0 0.0
    %289 = vmatprep.subr.mxu0 0.0
    %290 = vmatpush1.xpose.msra.mxu0 0.0
    %291 = vmatprep.subr.mxu0 0.0
    %292 = vmatpush1.xpose.msra.mxu0 0.0
    %293 = vmatprep.subr.mxu0 0.0
    %294 = vmatpush1.xpose.msra.mxu0 0.0
    %295 = vmatprep.subr.mxu0 0.0
    %296 = vmatpush1.xpose.msra.mxu0 0.0
    %297 = vmatprep.subr.mxu0 0.0
    %298 = vmatpush1.xpose.msra.mxu0 0.0
    %299 = vmatprep.subr.mxu0 0.0
    %300 = vmatpush1.xpose.msra.mxu0 0.0
    %301 = vmatprep.subr.mxu0 0.0
    %302 = vmatpush1.xpose.msra.mxu0 0.0
    %303 = vmatprep.subr.mxu0 0.0
    %304 = vmatpush1.xpose.msra.mxu0 %v271
    %305 = vmatprep.subr.mxu0 0.0
    %306 = vmatpush2.xpose.msra.mxu0 0.0
    %307 = vmatprep.subr.mxu0 0.0
    %308 = vmatpush2.xpose.msra.mxu0 0.0
    %309 = vmatprep.subr.mxu0 0.0
    %310 = vmatpush2.xpose.msra.mxu0 0.0
    %311 = vmatprep.subr.mxu0 0.0
    %312 = vmatpush2.xpose.msra.mxu0 0.0
    %313 = vmatprep.subr.mxu0 0.0
    %314 = vmatpush2.xpose.msra.mxu0 0.0
    %315 = vmatprep.subr.mxu0 0.0
    %316 = vmatpush2.xpose.msra.mxu0 0.0
    %317 = vmatprep.subr.mxu0 0.0
    %318 = vmatpush2.xpose.msra.mxu0 0.0
    %319 = vmatprep.subr.mxu0 0.0
    %320 = vmatpush2.xpose.msra.mxu0 0.0
    %321 = vmatprep.subr.mxu0 0.0
    %322 = vmatpush2.xpose.msra.mxu0 0.0
    %323 = vmatprep.subr.mxu0 0.0
    %324 = vmatpush2.xpose.msra.mxu0 0.0
    %325 = vmatprep.subr.mxu0 0.0
    %326 = vmatpush2.xpose.msra.mxu0 0.0
    %327 = vmatprep.subr.mxu0 0.0
    %328 = vmatpush2.xpose.msra.mxu0 0.0
    %329 = vmatprep.subr.mxu0 0.0
    %330 = vmatpush2.xpose.msra.mxu0 0.0
    %331 = vmatprep.subr.mxu0 0.0
    %332 = vmatpush2.xpose.msra.mxu0 0.0
    %333 = vmatprep.subr.mxu0 0.0
    %334 = vmatpush2.xpose.msra.mxu0 0.0
    %335 = vmatprep.subr.mxu0 0.0
    %336 = vmatpush2.xpose.msra.mxu0 0.0
    %337 = vmatprep.mubr.f32.mxu0 0.0
    %338 = vmatmul.mubr.f32.gmra.mxu0 %v268
    %v339 = vpop.f32.mrf.mxu0
    %v340 = vadd.f32 0.0, %v339
    %v341 = vpop.f32.mrf.mxu0
    %342 = vdwg.mxu0
    %v344 = vsel %vm266, %v265, 0
    %v347 = vsel %vm266, %v103, 0
    %349 = vmatprep.subr.mxu0 0.0
    %350 = vmatpush1.xpose.msra.mxu0 0.0
    %351 = vmatprep.subr.mxu0 0.0
    %352 = vmatpush1.xpose.msra.mxu0 0.0
    %353 = vmatprep.subr.mxu0 0.0
    %354 = vmatpush1.xpose.msra.mxu0 0.0
    %355 = vmatprep.subr.mxu0 0.0
    %356 = vmatpush1.xpose.msra.mxu0 0.0
    %357 = vmatprep.subr.mxu0 0.0
    %358 = vmatpush1.xpose.msra.mxu0 0.0
    %359 = vmatprep.subr.mxu0 0.0
    %360 = vmatpush1.xpose.msra.mxu0 0.0
    %361 = vmatprep.subr.mxu0 0.0
    %362 = vmatpush1.xpose.msra.mxu0 0.0
    %363 = vmatprep.subr.mxu0 0.0
    %364 = vmatpush1.xpose.msra.mxu0 0.0
    %365 = vmatprep.subr.mxu0 0.0
    %366 = vmatpush1.xpose.msra.mxu0 0.0
    %367 = vmatprep.subr.mxu0 0.0
    %368 = vmatpush1.xpose.msra.mxu0 0.0
    %369 = vmatprep.subr.mxu0 0.0
    %370 = vmatpush1.xpose.msra.mxu0 0.0
    %371 = vmatprep.subr.mxu0 0.0
    %372 = vmatpush1.xpose.msra.mxu0 0.0
    %373 = vmatprep.subr.mxu0 0.0
    %374 = vmatpush1.xpose.msra.mxu0 0.0
    %375 = vmatprep.subr.mxu0 0.0
    %376 = vmatpush1.xpose.msra.mxu0 0.0
    %377 = vmatprep.subr.mxu0 0.0
    %378 = vmatpush1.xpose.msra.mxu0 0.0
    %379 = vmatprep.subr.mxu0 0.0
    %380 = vmatpush1.xpose.msra.mxu0 %v347
    %381 = vmatprep.subr.mxu0 0.0
    %382 = vmatpush2.xpose.msra.mxu0 0.0
    %383 = vmatprep.subr.mxu0 0.0
    %384 = vmatpush2.xpose.msra.mxu0 0.0
    %385 = vmatprep.subr.mxu0 0.0
    %386 = vmatpush2.xpose.msra.mxu0 0.0
    %387 = vmatprep.subr.mxu0 0.0
    %388 = vmatpush2.xpose.msra.mxu0 0.0
    %389 = vmatprep.subr.mxu0 0.0
    %390 = vmatpush2.xpose.msra.mxu0 0.0
    %391 = vmatprep.subr.mxu0 0.0
    %392 = vmatpush2.xpose.msra.mxu0 0.0
    %393 = vmatprep.subr.mxu0 0.0
    %394 = vmatpush2.xpose.msra.mxu0 0.0
    %395 = vmatprep.subr.mxu0 0.0
    %396 = vmatpush2.xpose.msra.mxu0 0.0
    %397 = vmatprep.subr.mxu0 0.0
    %398 = vmatpush2.xpose.msra.mxu0 0.0
    %399 = vmatprep.subr.mxu0 0.0
    %400 = vmatpush2.xpose.msra.mxu0 0.0
    %401 = vmatprep.subr.mxu0 0.0
    %402 = vmatpush2.xpose.msra.mxu0 0.0
    %403 = vmatprep.subr.mxu0 0.0
    %404 = vmatpush2.xpose.msra.mxu0 0.0
    %405 = vmatprep.subr.mxu0 0.0
    %406 = vmatpush2.xpose.msra.mxu0 0.0
    %407 = vmatprep.subr.mxu0 0.0
    %408 = vmatpush2.xpose.msra.mxu0 0.0
    %409 = vmatprep.subr.mxu0 0.0
    %410 = vmatpush2.xpose.msra.mxu0 0.0
    %411 = vmatprep.subr.mxu0 0.0
    %412 = vmatpush2.xpose.msra.mxu0 0.0
    %413 = vmatprep.mubr.f32.mxu0 0.0
    %414 = vmatmul.mubr.f32.gmra.mxu0 %v344
    %v415 = vpop.f32.mrf.mxu0
    %v416 = vadd.f32 0.0, %v415
    %v417 = vpop.f32.mrf.mxu0
    %418 = vdwg.mxu0
    %v419 = vlaneseq
    %v420 = vshrl.u32 %v419, 7
    %v421 = vlaneseq
    %v422 = vand.u32 %v421, 127
    %vm423 = vcmp.le.s32.totalorder %v422, %v420
    %v424 = vsel %vm423, 1, 0
    %vm425 = vcmp.eq.s32.totalorder %v424, 1
    %v426 = vsel %vm425, %v340, -inf
    %v427 = vsel %vm425, %v416, -inf
    %vm428 = vcmask 64512
    %v429 = vsel %vm428, %v426, -inf
    %430 = vmax.xlane.f32.xlu0 %v429
    %v431 = vpop.xlane.xlu0 %430
    %v432 = vsel %vm428, %v427, -inf
    %433 = vmax.xlane.f32.xlu0 %v432
    %v434 = vpop.xlane.xlu0 %433
    %v435 = vsub.f32 %v426, %v431
    %v436 = vsub.f32 %v427, %v434
    %v437 = vmul.f32 %v435, 1.442695
    %v438 = vpow.pop %v437
    %v439 = vmul.f32 %v436, 1.442695
    %v440 = vpow.pop %v439
    %v441 = vsel %vm428, %v438, 0.0
    %442 = vadd.xlane.f32.xlu0 %v441
    %v443 = vpop.xlane.xlu0 %442
    %v444 = vsel %vm428, %v440, 0.0
    %445 = vadd.xlane.f32.xlu0 %v444
    %v446 = vpop.xlane.xlu0 %445
    %v447 = vrcp.pop %v443
    %v448 = vrcp.pop %v446
    %v449 = vmul.f32 %v443, %v447
    %v450 = vmul.f32 %v446, %v448
    %v451 = vsub.f32 2.0, %v449
    %v452 = vsub.f32 2.0, %v450
    %v453 = vmul.f32 %v447, %v451
    %v454 = vmul.f32 %v448, %v452
    %v455 = vmul.f32 %v438, %v453
    %v456 = vmul.f32 %v440, %v454
    %v458 = vsel %vm428, %v455, 0
    %460 = vmatprep.subr.mxu0 0.0
    %461 = vmatpush1.msra.mxu0 0.0
    %462 = vmatprep.subr.mxu0 0.0
    %463 = vmatpush1.msra.mxu0 0.0
    %464 = vmatprep.subr.mxu0 0.0
    %465 = vmatpush1.msra.mxu0 0.0
    %466 = vmatprep.subr.mxu0 0.0
    %467 = vmatpush1.msra.mxu0 0.0
    %468 = vmatprep.subr.mxu0 0.0
    %469 = vmatpush1.msra.mxu0 0.0
    %470 = vmatprep.subr.mxu0 0.0
    %471 = vmatpush1.msra.mxu0 0.0
    %472 = vmatprep.subr.mxu0 0.0
    %473 = vmatpush1.msra.mxu0 0.0
    %474 = vmatprep.subr.mxu0 0.0
    %475 = vmatpush1.msra.mxu0 0.0
    %476 = vmatprep.subr.mxu0 0.0
    %477 = vmatpush1.msra.mxu0 0.0
    %478 = vmatprep.subr.mxu0 0.0
    %479 = vmatpush1.msra.mxu0 0.0
    %480 = vmatprep.subr.mxu0 0.0
    %481 = vmatpush1.msra.mxu0 0.0
    %482 = vmatprep.subr.mxu0 0.0
    %483 = vmatpush1.msra.mxu0 0.0
    %484 = vmatprep.subr.mxu0 0.0
    %485 = vmatpush1.msra.mxu0 0.0
    %486 = vmatprep.subr.mxu0 0.0
    %487 = vmatpush1.msra.mxu0 0.0
    %488 = vmatprep.subr.mxu0 0.0
    %489 = vmatpush1.msra.mxu0 0.0
    %490 = vmatprep.subr.mxu0 0.0
    %491 = vmatpush1.msra.mxu0 %v256
    %492 = vmatprep.subr.mxu0 0.0
    %493 = vmatpush2.msra.mxu0 0.0
    %494 = vmatprep.subr.mxu0 0.0
    %495 = vmatpush2.msra.mxu0 0.0
    %496 = vmatprep.subr.mxu0 0.0
    %497 = vmatpush2.msra.mxu0 0.0
    %498 = vmatprep.subr.mxu0 0.0
    %499 = vmatpush2.msra.mxu0 0.0
    %500 = vmatprep.subr.mxu0 0.0
    %501 = vmatpush2.msra.mxu0 0.0
    %502 = vmatprep.subr.mxu0 0.0
    %503 = vmatpush2.msra.mxu0 0.0
    %504 = vmatprep.subr.mxu0 0.0
    %505 = vmatpush2.msra.mxu0 0.0
    %506 = vmatprep.subr.mxu0 0.0
    %507 = vmatpush2.msra.mxu0 0.0
    %508 = vmatprep.subr.mxu0 0.0
    %509 = vmatpush2.msra.mxu0 0.0
    %510 = vmatprep.subr.mxu0 0.0
    %511 = vmatpush2.msra.mxu0 0.0
    %512 = vmatprep.subr.mxu0 0.0
    %513 = vmatpush2.msra.mxu0 0.0
    %514 = vmatprep.subr.mxu0 0.0
    %515 = vmatpush2.msra.mxu0 0.0
    %516 = vmatprep.subr.mxu0 0.0
    %517 = vmatpush2.msra.mxu0 0.0
    %518 = vmatprep.subr.mxu0 0.0
    %519 = vmatpush2.msra.mxu0 0.0
    %520 = vmatprep.subr.mxu0 0.0
    %521 = vmatpush2.msra.mxu0 0.0
    %522 = vmatprep.subr.mxu0 0.0
    %523 = vmatpush2.msra.mxu0 0.0
    %524 = vmatprep.mubr.f32.mxu0 0.0
    %525 = vmatmul.mubr.f32.gmra.mxu0 %v458
    %v526 = vpop.f32.mrf.mxu0
    %v527 = vadd.f32 0.0, %v526
    %v528 = vpop.f32.mrf.mxu0
    %529 = vdwg.mxu0
    %v531 = vsel %vm428, %v456, 0
    %533 = vmatprep.subr.mxu0 0.0
    %534 = vmatpush1.msra.mxu0 0.0
    %535 = vmatprep.subr.mxu0 0.0
    %536 = vmatpush1.msra.mxu0 0.0
    %537 = vmatprep.subr.mxu0 0.0
    %538 = vmatpush1.msra.mxu0 0.0
    %539 = vmatprep.subr.mxu0 0.0
    %540 = vmatpush1.msra.mxu0 0.0
    %541 = vmatprep.subr.mxu0 0.0
    %542 = vmatpush1.msra.mxu0 0.0
    %543 = vmatprep.subr.mxu0 0.0
    %544 = vmatpush1.msra.mxu0 0.0
    %545 = vmatprep.subr.mxu0 0.0
    %546 = vmatpush1.msra.mxu0 0.0
    %547 = vmatprep.subr.mxu0 0.0
    %548 = vmatpush1.msra.mxu0 0.0
    %549 = vmatprep.subr.mxu0 0.0
    %550 = vmatpush1.msra.mxu0 0.0
    %551 = vmatprep.subr.mxu0 0.0
    %552 = vmatpush1.msra.mxu0 0.0
    %553 = vmatprep.subr.mxu0 0.0
    %554 = vmatpush1.msra.mxu0 0.0
    %555 = vmatprep.subr.mxu0 0.0
    %556 = vmatpush1.msra.mxu0 0.0
    %557 = vmatprep.subr.mxu0 0.0
    %558 = vmatpush1.msra.mxu0 0.0
    %559 = vmatprep.subr.mxu0 0.0
    %560 = vmatpush1.msra.mxu0 0.0
    %561 = vmatprep.subr.mxu0 0.0
    %562 = vmatpush1.msra.mxu0 0.0
    %563 = vmatprep.subr.mxu0 0.0
    %564 = vmatpush1.msra.mxu0 %v261
    %565 = vmatprep.subr.mxu0 0.0
    %566 = vmatpush2.msra.mxu0 0.0
    %567 = vmatprep.subr.mxu0 0.0
    %568 = vmatpush2.msra.mxu0 0.0
    %569 = vmatprep.subr.mxu0 0.0
    %570 = vmatpush2.msra.mxu0 0.0
    %571 = vmatprep.subr.mxu0 0.0
    %572 = vmatpush2.msra.mxu0 0.0
    %573 = vmatprep.subr.mxu0 0.0
    %574 = vmatpush2.msra.mxu0 0.0
    %575 = vmatprep.subr.mxu0 0.0
    %576 = vmatpush2.msra.mxu0 0.0
    %577 = vmatprep.subr.mxu0 0.0
    %578 = vmatpush2.msra.mxu0 0.0
    %579 = vmatprep.subr.mxu0 0.0
    %580 = vmatpush2.msra.mxu0 0.0
    %581 = vmatprep.subr.mxu0 0.0
    %582 = vmatpush2.msra.mxu0 0.0
    %583 = vmatprep.subr.mxu0 0.0
    %584 = vmatpush2.msra.mxu0 0.0
    %585 = vmatprep.subr.mxu0 0.0
    %586 = vmatpush2.msra.mxu0 0.0
    %587 = vmatprep.subr.mxu0 0.0
    %588 = vmatpush2.msra.mxu0 0.0
    %589 = vmatprep.subr.mxu0 0.0
    %590 = vmatpush2.msra.mxu0 0.0
    %591 = vmatprep.subr.mxu0 0.0
    %592 = vmatpush2.msra.mxu0 0.0
    %593 = vmatprep.subr.mxu0 0.0
    %594 = vmatpush2.msra.mxu0 0.0
    %595 = vmatprep.subr.mxu0 0.0
    %596 = vmatpush2.msra.mxu0 0.0
    %597 = vmatprep.mubr.f32.mxu0 0.0
    %598 = vmatmul.mubr.f32.gmra.mxu0 %v531
    %v599 = vpop.f32.mrf.mxu0
    %v600 = vadd.f32 0.0, %v599
    %v601 = vpop.f32.mrf.mxu0
    %602 = vdwg.mxu0
    %v605 = vrot.slane %v600, 7
    %vm606 = vcmask 1041409
    %v607 = vsel %vm606, %v605, %v527
    %v609 = vrot.slane %v527, 1
    %v610 = vsel %vm606, %v600, %v609
    %611 = vrot.lane.b32.xlu0 %v610, 16
    %v612 = vpop.permute.xlu0 %611
    %v614 = vrot.slane %v527, 2
    %v615 = vrot.slane %v600, 1
    %v616 = vsel %vm606, %v615, %v614
    %617 = vrot.lane.b32.xlu0 %v616, 32
    %v618 = vpop.permute.xlu0 %617
    %v620 = vrot.slane %v527, 3
    %v621 = vrot.slane %v600, 2
    %v622 = vsel %vm606, %v621, %v620
    %623 = vrot.lane.b32.xlu0 %v622, 48
    %v624 = vpop.permute.xlu0 %623
    %v626 = vrot.slane %v527, 4
    %v627 = vrot.slane %v600, 3
    %v628 = vsel %vm606, %v627, %v626
    %629 = vrot.lane.b32.xlu0 %v628, 64
    %v630 = vpop.permute.xlu0 %629
    %v632 = vrot.slane %v527, 5
    %v633 = vrot.slane %v600, 4
    %v634 = vsel %vm606, %v633, %v632
    %635 = vrot.lane.b32.xlu0 %v634, 80
    %v636 = vpop.permute.xlu0 %635
    %v638 = vrot.slane %v527, 6
    %v639 = vrot.slane %v600, 5
    %v640 = vsel %vm606, %v639, %v638
    %641 = vrot.lane.b32.xlu0 %v640, 96
    %v642 = vpop.permute.xlu0 %641
    %v644 = vrot.slane %v527, 7
    %v645 = vrot.slane %v600, 6
    %v646 = vsel %vm606, %v645, %v644
    %647 = vrot.lane.b32.xlu0 %v646, 112
    %v648 = vpop.permute.xlu0 %647
    %v650 = vsel %vm266, %v607, %v612
    %v651 = vsel %vm24, %v650, %v618
    %vm652 = vcmask 392192
    %v653 = vsel %vm652, %v651, %v624
    %vm654 = vcmask 523264
    %v655 = vsel %vm654, %v653, %v630
    %vm656 = vcmask 654336
    %v657 = vsel %vm656, %v655, %v636
    %vm658 = vcmask 785408
    %v659 = vsel %vm658, %v657, %v642
    %vm660 = vcmask 916480
    %v661 = vsel %vm660, %v659, %v648
    %662 = vst [vmem:[#allocation2] sm:$0x3] %v661
    // Predicated region
    $region18: #{tpu_custom_call.1} parent=1 // pred_check
      _
    $region19: #{tpu_custom_call.1} parent=1 // pred_check_branch
      %664 = sbr.rel (0) target = $region21
    $region20: #{tpu_custom_call.1} parent=1 // pred_region
      %s666 = ssub.s32 32, 32
      %667 = vsyncadd [#allocation3], %s666
      %s669 = sshll.u32 [#allocation2], 4
      %s670 = int_to_ptr.vmem [resolvable:$true] %s669
      %672 = dma.vmem_to_hbm [thread:$0]  %s670, 32, %s4, [#allocation3]
    $region21: #{tpu_custom_call.1} parent=1 // pred_fallthru
      _
    // Predicated region
    $region22: #{tpu_custom_call.1} parent=1 // pred_check
      _
    $region23: #{tpu_custom_call.1} parent=1 // pred_check_branch
      %674 = sbr.rel (0) target = $region25
    $region24: #{tpu_custom_call.1} parent=1 // pred_region
      %675 = dma.done [#allocation3], 32
    $region25: #{tpu_custom_call.1} parent=1 // pred_fallthru
      _
    %676 = vsyncpa [#allocation3], 1

</llo_original>
